<compile_context>
chip_gen: v5e
topology: v5e:2x2
jax: 0.10.0
libtpu: 0.0.40
codegen_flags: <defaults>
</compile_context>

<pallas_src>
import functools

import jax
import jax.numpy as jnp
from jax import lax
from jax.experimental import pallas as pl
from jax.experimental.pallas import tpu as pltpu

_ROW_SINGLE = 1024            # max rows handled as one block (no M grid, no padding)
_ROW_TILE = 512               # row tile target when M must be split
_LANE_TILE = 512              # output-column tile target
_K_SINGLE = 2048              # max contraction handled as one block (no K grid)
_FUSED_H_BYTES = 6 << 20      # VMEM budget for the resident h scratch in the fused path


# ----------------------------------------------------------------------------- helpers
def _round_up(a, b):
    return (a + b - 1) // b * b


def _cdiv(a, b):
    return -(-a // b)


def _row_tiles(m):
    if m <= _ROW_SINGLE:
        return 1, m, m                       # full-dim block, no 8-alignment needed
    g = _cdiv(m, _ROW_TILE)
    t = _round_up(_cdiv(m, g), 8)
    return g, t, g * t


def _lane_tiles(n):
    npad = _round_up(n, 128)
    if npad <= _LANE_TILE:
        return 1, npad, npad
    g = _cdiv(npad, _LANE_TILE)
    t = _round_up(_cdiv(npad, g), 128)
    return g, t, g * t


def _k_tiles(k):
    if k <= _K_SINGLE:
        return 1, k, k                       # full-dim block, no padding
    g = _cdiv(k, _LANE_TILE)
    t = _round_up(_cdiv(k, g), 128)
    return g, t, g * t


def _pad2d(a, rows, cols):
    pr, pc = rows - a.shape[0], cols - a.shape[1]
    if pr == 0 and pc == 0:
        return a
    return jnp.pad(a, ((0, pr), (0, pc)))


def _params(semantics, block_bytes, scratch_bytes=0):
    # Explicit scoped-VMEM budget: 2x for double buffering + scratch + margin,
    # floored at 16 MiB and capped at 48 MiB (headroom under v7x's 64 MiB physical).
    need = 2 * block_bytes + scratch_bytes + (2 << 20)
    limit = int(min(max(need, 16 << 20), 48 << 20))
    return pltpu.CompilerParams(dimension_semantics=semantics, vmem_limit_bytes=limit)


def _bytes(*shaped):
    return sum(int(jnp.prod(jnp.array(s))) * jnp.dtype(d).itemsize for s, d in shaped)


# ----------------------------------------------------------------------------- kernels
def _linear_kernel(x_ref, wt_ref, b_ref, o_ref):
    # Full-K block: no reduction grid axis, no accumulator scratch.
    o_ref[...] = (jnp.dot(x_ref[...], wt_ref[...], preferred_element_type=jnp.float32)
                  + b_ref[...]).astype(o_ref.dtype)


def _linear_acc_kernel(x_ref, wt_ref, b_ref, o_ref, acc_ref):
    # grid = (gm, gn, gk); K is the innermost reduction axis.
    @pl.when(pl.program_id(2) == 0)
    def _():
        acc_ref[...] = jnp.zeros_like(acc_ref)

    acc_ref[...] += jnp.dot(x_ref[...], wt_ref[...], preferred_element_type=jnp.float32)

    @pl.when(pl.program_id(2) == pl.num_programs(2) - 1)
    def _():
        o_ref[...] = (acc_ref[...] + b_ref[...]).astype(o_ref.dtype)


def _fused_single_kernel(x_ref, wt_ref, g_ref, b_ref, o_ref, *, inv_m, eps):
    # Whole batch in one block: matmul + BN statistics + normalize, all in VMEM.
    # Note: single-pass variance E[h^2]-E[h]^2 in f32.
    h = jnp.dot(x_ref[...], wt_ref[...], preferred_element_type=jnp.float32)
    mean = jnp.sum(h, axis=0, keepdims=True) * inv_m
    var = jnp.maximum(jnp.sum(h * h, axis=0, keepdims=True) * inv_m - mean * mean, 0.0)
    scale = g_ref[...] * lax.rsqrt(var + eps)
    shift = b_ref[...] - mean * scale
    o_ref[...] = (h * scale + shift).astype(o_ref.dtype)


def _fused_multi_kernel(x_ref, wt_ref, g_ref, b_ref, o_ref,
                        h_ref, psum_ref, psq_ref, scale_ref, shift_ref,
                        *, inv_m, eps):
    # grid = (2, gm).  Phase 0: matmul every row tile into a persistent VMEM h scratch
    # and accumulate column sums / sums-of-squares.  Phase 1: compute scale/shift once,
    # then normalize each resident h tile and write the output.  h never touches HBM.
    phase = pl.program_id(0)
    i = pl.program_id(1)

    @pl.when(jnp.logical_and(phase == 0, i == 0))
    def _():
        psum_ref[...] = jnp.zeros_like(psum_ref)
        psq_ref[...] = jnp.zeros_like(psq_ref)

    @pl.when(phase == 0)
    def _():
        h = jnp.dot(x_ref[...], wt_ref[...], preferred_element_type=jnp.float32)
        h_ref[i] = h
        psum_ref[...] += jnp.sum(h, axis=0, keepdims=True)
        psq_ref[...] += jnp.sum(h * h, axis=0, keepdims=True)

    @pl.when(jnp.logical_and(phase == 1, i == 0))
    def _():
        mean = psum_ref[...] * inv_m
        var = jnp.maximum(psq_ref[...] * inv_m - mean * mean, 0.0)
        scale = g_ref[...] * lax.rsqrt(var + eps)
        scale_ref[...] = scale
        shift_ref[...] = b_ref[...] - mean * scale

    @pl.when(phase == 1)
    def _():
        o_ref[...] = (h_ref[i] * scale_ref[...] + shift_ref[...]).astype(o_ref.dtype)


def _col_stats_kernel(h_ref, psum_ref, psq_ref):
    h = h_ref[...].astype(jnp.float32)
    psum_ref[...] = jnp.sum(h, axis=0, keepdims=True)
    psq_ref[...] = jnp.sum(h * h, axis=0, keepdims=True)


def _bn_apply_kernel(h_ref, scale_ref, shift_ref, o_ref):
    o_ref[...] = (h_ref[...].astype(jnp.float32) * scale_ref[...]
                  + shift_ref[...]).astype(o_ref.dtype)


# ----------------------------------------------------------------------------- wrappers
def _linear(x2, weight, bias, out_dtype):
    """x2: (M, K); weight: (N, K) torch layout; returns (M, N) in out_dtype."""
    M, K = x2.shape
    N = weight.shape[0]
    gm, tm, Mp = _row_tiles(M)
    gn, tn, Np = _lane_tiles(N)
    gk, tk, Kp = _k_tiles(K)

    xp = _pad2d(x2, Mp, Kp)                                   # no-op when gm == gk == 1
    wtp = _pad2d(weight.T.astype(x2.dtype), Kp, Np)           # small; pad N (and K if tiled)
    b = bias.astype(jnp.float32) if bias is not None else jnp.zeros((N,), jnp.float32)
    bp = _pad2d(b.reshape(1, N), 1, Np)

    dsz = jnp.dtype(x2.dtype).itemsize
    osz = jnp.dtype(out_dtype).itemsize
    cost = pl.CostEstimate(flops=2 * M * N * K, transcendentals=0,
                           bytes_accessed=dsz * (M * K + K * N) + osz * M * N)
    blk = _bytes(((tm, tk), x2.dtype), ((tk, tn), x2.dtype),
                 ((1, tn), jnp.float32), ((tm, tn), out_dtype))

    if gk == 1:
        out = pl.pallas_call(
            _linear_kernel,
            out_shape=jax.ShapeDtypeStruct((Mp, Np), out_dtype),
            grid=(gm, gn),
            in_specs=[pl.BlockSpec((tm, tk), lambda i, j: (i, 0)),
                      pl.BlockSpec((tk, tn), lambda i, j: (0, j)),
                      pl.BlockSpec((1, tn), lambda i, j: (0, j))],
            out_specs=pl.BlockSpec((tm, tn), lambda i, j: (i, j)),
            compiler_params=_params(("parallel", "parallel"), blk),
            cost_estimate=cost,
        )(xp, wtp, bp)
    else:
        out = pl.pallas_call(
            _linear_acc_kernel,
            out_shape=jax.ShapeDtypeStruct((Mp, Np), out_dtype),
            grid=(gm, gn, gk),
            in_specs=[pl.BlockSpec((tm, tk), lambda i, j, k: (i, k)),
                      pl.BlockSpec((tk, tn), lambda i, j, k: (k, j)),
                      pl.BlockSpec((1, tn), lambda i, j, k: (0, j))],
            out_specs=pl.BlockSpec((tm, tn), lambda i, j, k: (i, j)),
            scratch_shapes=[pltpu.VMEM((tm, tn), jnp.float32)],
            compiler_params=_params(("parallel", "parallel", "arbitrary"),
                                    blk, 4 * tm * tn),
            cost_estimate=cost,
        )(xp, wtp, bp)
    return out[:M, :N]


def _dense_bn_fused(x2, weight, gamma, beta, out_dtype, eps, gm, tm, Mp):
    """Single pallas_call: linear (no bias) + BatchNorm over columns (bnunits == units1)."""
    M, K = x2.shape
    N = weight.shape[0]
    Np = _round_up(N, 128)
    wtp = _pad2d(weight.T.astype(x2.dtype), K, Np)
    gp = _pad2d(gamma.reshape(1, N).astype(jnp.float32), 1, Np)
    bp = _pad2d(beta.reshape(1, N).astype(jnp.float32), 1, Np)

    dsz = jnp.dtype(x2.dtype).itemsize
    osz = jnp.dtype(out_dtype).itemsize
    cost = pl.CostEstimate(flops=2 * M * N * K + 8 * M * N, transcendentals=N,
                           bytes_accessed=dsz * (M * K + K * N) + osz * M * N + 8 * N)

    if gm == 1:
        blk = _bytes(((M, K), x2.dtype), ((K, Np), x2.dtype),
                     ((2, Np), jnp.float32), ((M, Np), out_dtype))
        out = pl.pallas_call(
            functools.partial(_fused_single_kernel, inv_m=1.0 / M, eps=float(eps)),
            out_shape=jax.ShapeDtypeStruct((M, Np), out_dtype),
            grid=(1,),
            in_specs=[pl.BlockSpec((M, K), lambda i: (0, 0)),
                      pl.BlockSpec((K, Np), lambda i: (0, 0)),
                      pl.BlockSpec((1, Np), lambda i: (0, 0)),
                      pl.BlockSpec((1, Np), lambda i: (0, 0))],
            out_specs=pl.BlockSpec((M, Np), lambda i: (0, 0)),
            compiler_params=_params(("arbitrary",), blk),
            cost_estimate=cost,
        )(x2, wtp, gp, bp)
        return out[:, :N]

    # Multi-tile rows: zero-padded rows contribute nothing to the sums (no bias).
    xp = _pad2d(x2, Mp, K)
    blk = _bytes(((tm, K), x2.dtype), ((K, Np), x2.dtype),
                 ((2, Np), jnp.float32), ((tm, Np), out_dtype))
    scratch = 4 * (gm * tm * Np + 4 * Np)
    out = pl.pallas_call(
        functools.partial(_fused_multi_kernel, inv_m=1.0 / M, eps=float(eps)),
        out_shape=jax.ShapeDtypeStruct((Mp, Np), out_dtype),
        grid=(2, gm),
        in_specs=[
            # phase 0 streams row tiles; phase 1 pins the last tile (no new DMA).
            pl.BlockSpec((tm, K), lambda p, i: (i * (1 - p) + (gm - 1) * p, 0)),
            pl.BlockSpec((K, Np), lambda p, i: (0, 0)),
            pl.BlockSpec((1, Np), lambda p, i: (0, 0)),
            pl.BlockSpec((1, Np), lambda p, i: (0, 0)),
        ],
        # phase 0 never writes the output; keep its index pinned so nothing is flushed
        # until phase 1 produces the normalized tiles.
        out_specs=pl.BlockSpec((tm, Np), lambda p, i: (i * p, 0)),
        scratch_shapes=[
            pltpu.VMEM((gm, tm, Np), jnp.float32),   # resident h
            pltpu.VMEM((1, Np), jnp.float32),        # column sum
            pltpu.VMEM((1, Np), jnp.float32),        # column sum of squares
            pltpu.VMEM((1, Np), jnp.float32),        # scale
            pltpu.VMEM((1, Np), jnp.float32),        # shift
        ],
        compiler_params=_params(("arbitrary", "arbitrary"), blk, scratch),
        cost_estimate=cost,
    )(xp, wtp, gp, bp)
    return out[:M, :N]


def _batchnorm(hf, gamma, beta, out_dtype, eps):
    """General BatchNorm1d over a 2-D activation hf: (Mb, C) -> (Mb, C)."""
    Mb, C = hf.shape
    gm, tm, Mp = _row_tiles(Mb)
    gc, tc, Cp = _lane_tiles(C)
    hp = _pad2d(hf, Mp, Cp)
    hsz = jnp.dtype(hf.dtype).itemsize

    psum, psq = pl.pallas_call(
        _col_stats_kernel,
        out_shape=(jax.ShapeDtypeStruct((gm, Cp), jnp.float32),
                   jax.ShapeDtypeStruct((gm, Cp), jnp.float32)),
        grid=(gm, gc),
        in_specs=[pl.BlockSpec((tm, tc), lambda i, j: (i, j))],
        out_specs=(pl.BlockSpec((1, tc), lambda i, j: (i, j)),
                   pl.BlockSpec((1, tc), lambda i, j: (i, j))),
        compiler_params=_params(("parallel", "parallel"),
                                _bytes(((tm, tc), hf.dtype), ((2, tc), jnp.float32))),
    )(hp)

    mean = psum[:, :C].sum(axis=0) / Mb
    var = jnp.maximum(psq[:, :C].sum(axis=0) / Mb - mean * mean, 0.0)   # biased variance
    scale = gamma.astype(jnp.float32) / jnp.sqrt(var + eps)
    shift = beta.astype(jnp.float32) - mean * scale

    y = pl.pallas_call(
        _bn_apply_kernel,
        out_shape=jax.ShapeDtypeStruct((Mp, Cp), out_dtype),
        grid=(gm, gc),
        in_specs=[pl.BlockSpec((tm, tc), lambda i, j: (i, j)),
                  pl.BlockSpec((1, tc), lambda i, j: (0, j)),
                  pl.BlockSpec((1, tc), lambda i, j: (0, j))],
        out_specs=pl.BlockSpec((tm, tc), lambda i, j: (i, j)),
        compiler_params=_params(("parallel", "parallel"),
                                _bytes(((tm, tc), hf.dtype), ((2, tc), jnp.float32),
                                       ((tm, tc), out_dtype))),
    )(hp, _pad2d(scale.reshape(1, C), 1, Cp), _pad2d(shift.reshape(1, C), 1, Cp))
    return y[:Mb, :C]


# ----------------------------------------------------------------------------- forward
def dense_forward(x, weight, bias=None, gamma=None, beta=None, bnunits=0, eps=1e-5):
    """Forward pass of Dense.

    x:          (..., units0)
    weight:     (units1, units0)  -- torch nn.Linear layout
    bias:       (units1,) or None (the module forces bias off when bnunits > 0)
    gamma/beta: (bnunits,)        -- BatchNorm affine params (only if bnunits > 0)
    """
    units1, units0 = weight.shape
    lead = x.shape[:-1]
    x2 = x.reshape(-1, units0)
    M, K, N = x2.shape[0], units0, units1
    out_dtype = x.dtype
    Np = _round_up(N, 128)

    # Fully-fused path: the module's normal BN usage (bnunits == units1, bias off) with
    # shapes small enough to keep h resident in VMEM.
    fuse = (bnunits > 0 and bnunits == N and bias is None
            and K <= _K_SINGLE and Np <= _LANE_TILE)
    if fuse:
        gm, tm, Mp = _row_tiles(M)
        if gm > 1 and Mp * Np * 4 > _FUSED_H_BYTES:
            fuse = False
    if fuse:
        y = _dense_bn_fused(x2, weight, gamma, beta, out_dtype, eps, gm, tm, Mp)
        return y.reshape(*lead, N)

    # Plain linear (+ optional bias), then a generic tiled BatchNorm pass if requested.
    h = _linear(x2, weight, bias, out_dtype)
    if bnunits > 0:
        hf = h.reshape(-1, bnunits)
        h = _batchnorm(hf, gamma, beta, out_dtype, eps).reshape(M, N)
    return h.reshape(*lead, N)


# ----------------------------------------------------------------------------- reference / test
def _reference(x, weight, bias, gamma, beta, bnunits, eps=1e-5):
    h = x @ weight.T + (bias if bias is not None else 0.0)
    if bnunits > 0:
        size = h.shape
        hf = h.reshape(-1, bnunits)
        mean = hf.mean(axis=0, keepdims=True)
        var = ((hf - mean) ** 2).mean(axis=0, keepdims=True)
        hf = (hf - mean) / jnp.sqrt(var + eps) * gamma + beta
        h = hf.reshape(size)
    return h


def _check(out, ref, tol, name):
    err = float(jnp.abs(out - ref).max())
    assert jnp.allclose(out, ref, atol=tol, rtol=tol), f"{name}: max err {err}"


if __name__ == "__main__":
    key = jax.random.PRNGKey(0)
    keys = jax.random.split(key, 16)

    # --- Case 1: Dense(64, 32, bnunits=32): bias forced off, single fused kernel. ---
    B, u0, u1 = 16, 64, 32
    x = jax.random.normal(keys[0], (B, u0), dtype=jnp.float32)
    w = jax.random.normal(keys[1], (u1, u0), dtype=jnp.float32) * 0.1
    g = 1.0 + 0.05 * jax.random.normal(keys[2], (u1,), dtype=jnp.float32)
    b = 0.05 * jax.random.normal(keys[3], (u1,), dtype=jnp.float32)
    out = dense_forward(x, w, bias=None, gamma=g, beta=b, bnunits=u1)
    jax.block_until_ready(out)
    _check(out, _reference(x, w, None, g, b, u1), 1e-4, "case1")

    # --- Case 2: Dense(64, 32, bnunits=0, bias=True): plain linear + bias. ---
    bias = 0.1 * jax.random.normal(keys[4], (u1,), dtype=jnp.float32)
    out = dense_forward(x, w, bias=bias, bnunits=0)
    jax.block_until_ready(out)
    _check(out, _reference(x, w, bias, None, None, 0), 1e-4, "case2")

    # --- Case 3: Dense(640, 96, bnunits=96) on 520 rows: single fused kernel,
    #     full-extent M/K blocks, no activation padding. ---
    B3, u0, u1 = 520, 640, 96
    x3 = jax.random.normal(keys[5], (B3, u0), dtype=jnp.float32)
    w3 = jax.random.normal(keys[6], (u1, u0), dtype=jnp.float32) * 0.05
    g3 = 1.0 + 0.05 * jax.random.normal(keys[7], (u1,), dtype=jnp.float32)
    b3 = 0.05 * jax.random.normal(keys[8], (u1,), dtype=jnp.float32)
    out = dense_forward(x3, w3, bias=None, gamma=g3, beta=b3, bnunits=u1)
    jax.block_until_ready(out)
    _check(out, _reference(x3, w3, None, g3, b3, u1), 2e-3, "case3")

    # --- Case 4: Dense(128, 64, bnunits=64) on 1536 rows: exercises the two-phase
    #     fused kernel (multi-row-tile, h resident in VMEM scratch). ---
    B4, u0, u1 = 1536, 128, 64
    x4 = jax.random.normal(keys[9], (B4, u0), dtype=jnp.float32)
    w4 = jax.random.normal(keys[10], (u1, u0), dtype=jnp.float32) * 0.05
    g4 = 1.0 + 0.05 * jax.random.normal(keys[11], (u1,), dtype=jnp.float32)
    b4 = 0.05 * jax.random.normal(keys[12], (u1,), dtype=jnp.float32)
    out = dense_forward(x4, w4, bias=None, gamma=g4, beta=b4, bnunits=u1)
    jax.block_until_ready(out)
    _check(out, _reference(x4, w4, None, g4, b4, u1), 2e-3, "case4")

    # --- Case 5: Dense(32, 48, bnunits=24): bnunits != units1, general fallback
    #     (linear kernel + tiled column-stats + BN-apply kernels). ---
    B5, u0, u1, bn = 10, 32, 48, 24
    x5 = jax.random.normal(keys[13], (B5, u0), dtype=jnp.float32)
    w5 = jax.random.normal(keys[14], (u1, u0), dtype=jnp.float32) * 0.1
    g5 = 1.0 + 0.05 * jax.random.normal(keys[15], (bn,), dtype=jnp.float32)
    b5 = 0.05 * jax.random.normal(keys[0], (bn,), dtype=jnp.float32)
    out = dense_forward(x5, w5, bias=None, gamma=g5, beta=b5, bnunits=bn)
    jax.block_until_ready(out)
    _check(out, _reference(x5, w5, None, g5, b5, bn), 1e-4, "case5")

    print("KERNEL_OK")
</pallas_src>

<mosaic_0001>
module attributes {stable_mosaic.version = 11 : i64} {
  func.func @_fused_single_kernel(%arg0: i32, %arg1: memref<16x64xf32, #tpu.memory_space<vmem>>, %arg2: memref<64x128xf32, #tpu.memory_space<vmem>>, %arg3: memref<1x128xf32, #tpu.memory_space<vmem>>, %arg4: memref<1x128xf32, #tpu.memory_space<vmem>>, %arg5: memref<16x128xf32, #tpu.memory_space<vmem>>) attributes {dimension_semantics = [#tpu.dimension_semantics<arbitrary>], iteration_bounds = array<i64: 1>, scalar_prefetch = 0 : i64, scratch_operands = 0 : i64, tpu.core_type = #tpu.core_type<tc>, window_params = [{pipeline_mode = #tpu.pipeline_mode<synchronous>, transform_indices = @transform_0, window_bounds = array<i64: 16, 64>}, {pipeline_mode = #tpu.pipeline_mode<synchronous>, transform_indices = @transform_1, window_bounds = array<i64: 64, 128>}, {pipeline_mode = #tpu.pipeline_mode<synchronous>, transform_indices = @transform_2, window_bounds = array<i64: 1, 128>}, {pipeline_mode = #tpu.pipeline_mode<synchronous>, transform_indices = @transform_3, window_bounds = array<i64: 1, 128>}, {pipeline_mode = #tpu.pipeline_mode<synchronous>, transform_indices = @transform_4, window_bounds = array<i64: 16, 128>}]} {
    %c0 = arith.constant 0 : index
    %c0_0 = arith.constant 0 : index
    %0 = vector.load %arg1[%c0, %c0_0] : memref<16x64xf32, #tpu.memory_space<vmem>>, vector<16x64xf32>
    %c0_1 = arith.constant 0 : index
    %c0_2 = arith.constant 0 : index
    %1 = vector.load %arg2[%c0_1, %c0_2] : memref<64x128xf32, #tpu.memory_space<vmem>>, vector<64x128xf32>
    %cst = arith.constant dense<0.000000e+00> : vector<16x128xf32>
    %2 = tpu.matmul %0, %1, %cst {dimension_numbers = #tpu.dot_dimension_numbers<[1], [0], [0], [1], [0, 0, 1, 1], [], []>} : vector<16x64xf32>, vector<64x128xf32>, vector<16x128xf32> -> vector<16x128xf32>
    %cst_3 = arith.constant dense<0.000000e+00> : vector<128xf32>
    %3 = vector.multi_reduction <add>, %2, %cst_3 [0] : vector<16x128xf32> to vector<128xf32>
    %4 = vector.shape_cast %3 : vector<128xf32> to vector<1x128xf32>
    %cst_4 = arith.constant 6.250000e-02 : f32
    %5 = vector.broadcast %cst_4 : f32 to vector<1x128xf32>
    %6 = arith.mulf %4, %5 : vector<1x128xf32>
    %7 = arith.mulf %2, %2 : vector<16x128xf32>
    %cst_5 = arith.constant dense<0.000000e+00> : vector<128xf32>
    %8 = vector.multi_reduction <add>, %7, %cst_5 [0] : vector<16x128xf32> to vector<128xf32>
    %9 = vector.shape_cast %8 : vector<128xf32> to vector<1x128xf32>
    %cst_6 = arith.constant 6.250000e-02 : f32
    %10 = vector.broadcast %cst_6 : f32 to vector<1x128xf32>
    %11 = arith.mulf %9, %10 : vector<1x128xf32>
    %12 = arith.mulf %6, %6 : vector<1x128xf32>
    %13 = arith.subf %11, %12 : vector<1x128xf32>
    %cst_7 = arith.constant 0.000000e+00 : f32
    %14 = vector.broadcast %cst_7 : f32 to vector<1x128xf32>
    %15 = arith.maximumf %13, %14 : vector<1x128xf32>
    %c0_8 = arith.constant 0 : index
    %c0_9 = arith.constant 0 : index
    %16 = vector.load %arg3[%c0_8, %c0_9] : memref<1x128xf32, #tpu.memory_space<vmem>>, vector<1x128xf32>
    %cst_10 = arith.constant 9.99999974E-6 : f32
    %17 = vector.broadcast %cst_10 : f32 to vector<1x128xf32>
    %18 = arith.addf %15, %17 : vector<1x128xf32>
    %19 = math.rsqrt %18 : vector<1x128xf32>
    %20 = arith.mulf %16, %19 : vector<1x128xf32>
    %c0_11 = arith.constant 0 : index
    %c0_12 = arith.constant 0 : index
    %21 = vector.load %arg4[%c0_11, %c0_12] : memref<1x128xf32, #tpu.memory_space<vmem>>, vector<1x128xf32>
    %22 = arith.mulf %6, %20 : vector<1x128xf32>
    %23 = arith.subf %21, %22 : vector<1x128xf32>
    %24 = vector.broadcast %20 : vector<1x128xf32> to vector<16x128xf32>
    %25 = arith.mulf %2, %24 : vector<16x128xf32>
    %26 = vector.broadcast %23 : vector<1x128xf32> to vector<16x128xf32>
    %27 = arith.addf %25, %26 : vector<16x128xf32>
    %c0_13 = arith.constant 0 : index
    %c0_14 = arith.constant 0 : index
    %28 = vector.load %arg5[%c0_13, %c0_14] : memref<16x128xf32, #tpu.memory_space<vmem>>, vector<16x128xf32>
    tpu.vector_store %arg5[%c0_13, %c0_14], %27 {strides = array<i32>} : memref<16x128xf32, #tpu.memory_space<vmem>>, vector<16x128xf32>,
    return
  }
  func.func @transform_0(%arg0: i32) -> (i32, i32) {
    %c0_i32 = arith.constant 0 : i32
    %c0_i32_0 = arith.constant 0 : i32
    %c0_i32_1 = arith.constant 0 : i32
    return %c0_i32, %c0_i32_0 : i32, i32
  }
  func.func @transform_1(%arg0: i32) -> (i32, i32) {
    %c0_i32 = arith.constant 0 : i32
    %c0_i32_0 = arith.constant 0 : i32
    %c0_i32_1 = arith.constant 0 : i32
    return %c0_i32, %c0_i32_0 : i32, i32
  }
  func.func @transform_2(%arg0: i32) -> (i32, i32) {
    %c0_i32 = arith.constant 0 : i32
    %c0_i32_0 = arith.constant 0 : i32
    %c0_i32_1 = arith.constant 0 : i32
    return %c0_i32, %c0_i32_0 : i32, i32
  }
  func.func @transform_3(%arg0: i32) -> (i32, i32) {
    %c0_i32 = arith.constant 0 : i32
    %c0_i32_0 = arith.constant 0 : i32
    %c0_i32_1 = arith.constant 0 : i32
    return %c0_i32, %c0_i32_0 : i32, i32
  }
  func.func @transform_4(%arg0: i32) -> (i32, i32) {
    %c0_i32 = arith.constant 0 : i32
    %c0_i32_0 = arith.constant 0 : i32
    %c0_i32_1 = arith.constant 0 : i32
    return %c0_i32, %c0_i32_0 : i32, i32
  }
}

</mosaic_0001>

<llo_original>
// kernel: tpu_custom_call.1
$region0: #{tpu_custom_call.1}
  #allocation0 [shape = 'u32[]', space=smem, size = 0x4, offset = 0x4, fixed_abs, tag = 'smem constant byte address 0x4 - core index']
  #allocation1 [shape = 'u32[72,128]{1,0:T(1,128)}', space=vmem, size = 0x9000, scoped, tag = 'internal scratch']
  %s0 = inlined_call_operand.hbm [shape: f32[16,64], index: 0, kind: input, shape index: {}]
  %s1 = inlined_call_operand.hbm [shape: f32[64,128], index: 1, kind: input, shape index: {}]
  %s2 = inlined_call_operand.vmem [shape: f32[1,128], index: 2, kind: input, shape index: {}]
  %s3 = inlined_call_operand.vmem [shape: f32[1,128], index: 3, kind: input, shape index: {}]
  %s4 = inlined_call_operand.hbm [shape: f32[16,128], index: 4, kind: output, shape index: {}]
  %s5 = sld [smem:[#allocation0]]
  $region34: #{tpu_custom_call.1} parent=0
    _
  %s7 = ssub.s32 1, %s5
  %s8 = scalar_select 0, %s7, %s5
  $region1: #{tpu_custom_call.1} parent=0
    #allocation2 [shape = 'u8[8192]{0}', space=vmem, size = 0x2000, scoped, tag = 'input window, operand 0, single buffered']
    #allocation3 [shape = 's32[1]{0}', space=sflag, size = 0x4, scoped, tag = 'scoped memory for tpu_custom_call.1']
    #allocation4 [shape = 's32[1]{0}', space=sflag, size = 0x4, scoped, tag = 'scoped memory for tpu_custom_call.1']
    #allocation5 [shape = 'u8[32768]{0}', space=vmem, size = 0x8000, scoped, tag = 'input window, operand 1, single buffered']
    #allocation6 [shape = 's32[1]{0}', space=sflag, size = 0x4, scoped, tag = 'scoped memory for tpu_custom_call.1']
    #allocation7 [shape = 'u8[8192]{0}', space=vmem, size = 0x2000, scoped, tag = 'output window, operand 0, single buffered']
    %9 = vsyncpa [#allocation3], 0
    %10 = vsyncpa [#allocation6], 0
    %11 = vsyncpa [#allocation4], 0
    // Predicated region
    $region2: #{tpu_custom_call.1} parent=1 // pred_check
      _
    $region3: #{tpu_custom_call.1} parent=1 // pred_check_branch
      %13 = sbr.rel (0) target = $region5
    $region4: #{tpu_custom_call.1} parent=1 // pred_region
      %15 = vsyncadd [#allocation3], 0
      %s16 = sshll.u32 %s0, 4
      %s17 = int_to_ptr.hbm [resolvable:$true] %s16
      %s18 = sshll.u32 [#allocation2], 4
      %s19 = int_to_ptr.vmem [resolvable:$true] %s18
      %24 = dma.hbm_to_vmem [thread:$0]  %s17, 256, %s19, [#allocation3], 128, 128, 8
    $region5: #{tpu_custom_call.1} parent=1 // pred_fallthru
      _
    // Predicated region
    $region6: #{tpu_custom_call.1} parent=1 // pred_check
      _
    $region7: #{tpu_custom_call.1} parent=1 // pred_check_branch
      %26 = sbr.rel (0) target = $region9
    $region8: #{tpu_custom_call.1} parent=1 // pred_region
      %28 = vsyncadd [#allocation6], 0
      %s29 = sshll.u32 %s1, 4
      %s30 = int_to_ptr.hbm [resolvable:$true] %s29
      %s31 = sshll.u32 [#allocation5], 4
      %s32 = int_to_ptr.vmem [resolvable:$true] %s31
      %37 = dma.hbm_to_vmem [thread:$0]  %s30, 1024, %s32, [#allocation6], 128, 128, 8
    $region9: #{tpu_custom_call.1} parent=1 // pred_fallthru
      _
    // Predicated region
    $region10: #{tpu_custom_call.1} parent=1 // pred_check
      _
    $region11: #{tpu_custom_call.1} parent=1 // pred_check_branch
      %39 = sbr.rel (0) target = $region13
    $region12: #{tpu_custom_call.1} parent=1 // pred_region
      _
    $region13: #{tpu_custom_call.1} parent=1 // pred_fallthru
      _
    // Predicated region
    $region14: #{tpu_custom_call.1} parent=1 // pred_check
      _
    $region15: #{tpu_custom_call.1} parent=1 // pred_check_branch
      %41 = sbr.rel (0) target = $region17
    $region16: #{tpu_custom_call.1} parent=1 // pred_region
      _
    $region17: #{tpu_custom_call.1} parent=1 // pred_fallthru
      _
    // Predicated region
    $region18: #{tpu_custom_call.1} parent=1 // pred_check
      _
    $region19: #{tpu_custom_call.1} parent=1 // pred_check_branch
      %43 = sbr.rel (0) target = $region21
    $region20: #{tpu_custom_call.1} parent=1 // pred_region
      %45 = dma.done [#allocation3], 256
    $region21: #{tpu_custom_call.1} parent=1 // pred_fallthru
      _
    // Predicated region
    $region22: #{tpu_custom_call.1} parent=1 // pred_check
      _
    $region23: #{tpu_custom_call.1} parent=1 // pred_check_branch
      %47 = sbr.rel (0) target = $region25
    $region24: #{tpu_custom_call.1} parent=1 // pred_region
      %49 = dma.done [#allocation6], 1024
    $region25: #{tpu_custom_call.1} parent=1 // pred_fallthru
      _
    %v50 = vld [vmem:[#allocation2] sm:$0xff]
    %v51 = vld [vmem:[#allocation2 + $0x8] sm:$0xff]
    %v52 = vld [vmem:[#allocation5] sm:$0xff]
    %v53 = vld [vmem:[#allocation5 + $0x8] sm:$0xff]
    %v54 = vld [vmem:[#allocation5 + $0x10] sm:$0xff]
    %v55 = vld [vmem:[#allocation5 + $0x18] sm:$0xff]
    %v56 = vld [vmem:[#allocation5 + $0x20] sm:$0xff]
    %v57 = vld [vmem:[#allocation5 + $0x28] sm:$0xff]
    %v58 = vld [vmem:[#allocation5 + $0x30] sm:$0xff]
    %v59 = vld [vmem:[#allocation5 + $0x38] sm:$0xff]
    %vm60 = vcmask 523264
    %v62 = vsel %vm60, %v50, 0
    %v65 = vsel %vm60, %v51, 0
    %67 = vmatpush.msra.mxu0 0.0
    %68 = vmatpush.msra.mxu0 0.0
    %69 = vmatpush.msra.mxu0 0.0
    %70 = vmatpush.msra.mxu0 0.0
    %71 = vmatpush.msra.mxu0 0.0
    %72 = vmatpush.msra.mxu0 0.0
    %73 = vmatpush.msra.mxu0 0.0
    %74 = vmatpush.msra.mxu0 0.0
    %75 = vmatpush.msra.mxu0 %v59
    %76 = vmatpush.msra.mxu0 %v58
    %77 = vmatpush.msra.mxu0 %v57
    %78 = vmatpush.msra.mxu0 %v56
    %79 = vmatpush.msra.mxu0 %v55
    %80 = vmatpush.msra.mxu0 %v54
    %81 = vmatpush.msra.mxu0 %v53
    %82 = vmatpush.msra.mxu0 %v52
    %83 = vmatmul.f32.gmra.mxu0 %v62
    %v84 = vpop.f32.mrf.mxu0
    %v85 = vadd.f32 0.0, %v84
    %86 = vmatmul.f32.gmra.mxu0 %v65
    %v87 = vpop.f32.mrf.mxu0
    %v88 = vadd.f32 0.0, %v87
    %89 = vdwg.mxu0
    %v90 = vadd.f32 %v85, %v88
    %v91 = vrot.slane %v90, 4
    %v92 = vadd.f32 %v90, %v91
    %v93 = vrot.slane %v92, 2
    %v94 = vadd.f32 %v92, %v93
    %v95 = vrot.slane %v94, 1
    %v96 = vadd.f32 %v94, %v95
    %v97 = vmul.f32 %v96, 0.0625
    %v98 = vmul.f32 %v85, %v85
    %v99 = vmul.f32 %v88, %v88
    %v100 = vadd.f32 %v98, %v99
    %v101 = vrot.slane %v100, 4
    %v102 = vadd.f32 %v100, %v101
    %v103 = vrot.slane %v102, 2
    %v104 = vadd.f32 %v102, %v103
    %v105 = vrot.slane %v104, 1
    %v106 = vadd.f32 %v104, %v105
    %v107 = vmul.f32 %v106, 0.0625
    %v108 = vmul.f32 %v97, %v97
    %v109 = vsub.f32 %v107, %v108
    %v110 = vmax.f32 %v109, 0.0
    %v111 = vld [vmem:[%s2] sm:$0x1]
    %v112 = vadd.f32 %v110, 1e-05
    %v113 = vrsqrt.pop %v112
    %v114 = vmul.f32 %v113, %v112
    %v115 = vmul.f32 %v114, %v113
    %v116 = vmul.f32 0.5, %v115
    %v117 = vsub.f32 1.5, %v116
    %v118 = vmul.f32 %v113, %v117
    %vm119 = vweird.f32 %v112
    %vm120 = vweird.f32 %v113
    %vm121 = vmor %vm119, %vm120
    %v122 = vsel %vm121, %v113, %v118
    %v123 = vmul.f32 %v111, %v122
    %v124 = vld [vmem:[%s3] sm:$0x1]
    %v125 = vmul.f32 %v97, %v123
    %v126 = vsub.f32 %v124, %v125
    %v128 = vperm.slane %v123, 0
    %v130 = vmul.f32 %v85, %v128
    %v131 = vmul.f32 %v88, %v128
    %v133 = vperm.slane %v126, 0
    %v135 = vadd.f32 %v130, %v133
    %v136 = vadd.f32 %v131, %v133
    %137 = vst [vmem:[#allocation7] sm:$0xff] %v135
    %138 = vst [vmem:[#allocation7 + $0x8] sm:$0xff] %v136
    // Predicated region
    $region26: #{tpu_custom_call.1} parent=1 // pred_check
      _
    $region27: #{tpu_custom_call.1} parent=1 // pred_check_branch
      %140 = sbr.rel (0) target = $region29
    $region28: #{tpu_custom_call.1} parent=1 // pred_region
      %142 = vsyncadd [#allocation4], 0
      %s143 = sshll.u32 [#allocation7], 4
      %s144 = int_to_ptr.vmem [resolvable:$true] %s143
      %s145 = sshll.u32 %s4, 4
      %s146 = int_to_ptr.hbm [resolvable:$true] %s145
      %151 = dma.vmem_to_hbm [thread:$0]  %s144, 256, %s146, [#allocation4], 128, 128, 8
    $region29: #{tpu_custom_call.1} parent=1 // pred_fallthru
      _
    // Predicated region
    $region30: #{tpu_custom_call.1} parent=1 // pred_check
      _
    $region31: #{tpu_custom_call.1} parent=1 // pred_check_branch
      %153 = sbr.rel (0) target = $region33
    $region32: #{tpu_custom_call.1} parent=1 // pred_region
      %155 = dma.done [#allocation4], 256
    $region33: #{tpu_custom_call.1} parent=1 // pred_fallthru
      _
    %156 = vsyncpa [#allocation3], 1
    %157 = vsyncpa [#allocation6], 1
    %158 = vsyncpa [#allocation4], 1

</llo_original>
